<compile_context>
chip_gen: v6e
topology: v6e:2x2x1
jax: 0.10.0
libtpu: 0.0.40
codegen_flags: <defaults>
</compile_context>

<pallas_src>
import functools

import jax
import jax.numpy as jnp
from jax.experimental import pallas as pl
from jax.experimental.pallas import tpu as pltpu

EPS = 1e-5
NEG_SLOPE = 0.01


def _resnet_block_kernel(x_ref, w1_ref, w2_ref, g1_ref, be1_ref, g2_ref, be2_ref,
                         o_ref, *, width, chans, height):
    """Whole ResNet block, everything resident in VMEM.

    x_ref            : (N*H, W*C)     activations, lane index = w*C + c (128 lanes)
    w1_ref, w2_ref   : (3*W*C, W*C)   block-banded conv weights, ky taps stacked on rows
    g*_ref, be*_ref  : (1, W*C)       BN gamma / beta pre-broadcast to lanes
    o_ref            : (N*H, W*C)     output
    """
    NH, WC = x_ref.shape
    inv_cnt = 1.0 / float(NH * width)                 # 1 / (N*H*W) elements per channel

    # Row-validity masks for the H halo (built once; also masks the cyclic wrap-around
    # and the image boundary inside the stacked batch).
    rows = jax.lax.broadcasted_iota(jnp.int32, (NH, WC), 0)
    rmod = rows % height
    up_valid = rmod != 0                              # row h-1 exists
    dn_valid = rmod != (height - 1)                   # row h+1 exists

    def channel_group_sum(v):
        # v: (1, W*C).  At every lane, the sum over all lanes of the same channel
        # (lanes congruent mod C).  Cyclic lane rolls on the XLU (free slot).
        s = v
        if width & (width - 1) == 0:                  # power-of-two W: log2(W) doublings
            shift = chans
            while shift < WC:
                s = s + pltpu.roll(s, shift, axis=1)
                shift *= 2
        else:
            for k in range(1, width):
                s = s + pltpu.roll(v, k * chans, axis=1)
        return s

    def conv3x3(z, w_ref):
        # H halo: sublane roll (XLU) + mask (VPU).  kx taps and W zero-padding are baked
        # into the banded weights.  Single MXU matmul with a 384-deep contraction.
        up = jnp.where(up_valid, pltpu.roll(z, 1, axis=0), 0.0)        # row h-1
        dn = jnp.where(dn_valid, pltpu.roll(z, NH - 1, axis=0), 0.0)   # row h+1
        lhs = jnp.concatenate([up, z, dn], axis=-1)                    # (NH, 3*W*C)
        return jnp.dot(lhs, w_ref[...], preferred_element_type=jnp.float32)

    def bn(z, gamma_l, beta_l):
        # Training-mode BN (batch mean, biased variance), one-pass stats folded into a
        # single per-channel scale/shift applied in one multiply-add pass.
        csum = jnp.sum(z, axis=0, keepdims=True)       # (1, W*C) per-(w,c) sums
        csq = jnp.sum(z * z, axis=0, keepdims=True)
        mean_l = channel_group_sum(csum) * inv_cnt     # channel mean broadcast to lanes
        ex2_l = channel_group_sum(csq) * inv_cnt
        var_l = ex2_l - mean_l * mean_l
        scale_l = gamma_l * jax.lax.rsqrt(var_l + EPS)
        shift_l = beta_l - mean_l * scale_l
        return z * scale_l + shift_l

    leaky = lambda z: jnp.maximum(z, NEG_SLOPE * z)

    x = x_ref[...]
    h1 = leaky(bn(conv3x3(x, w1_ref), g1_ref[...], be1_ref[...]))
    h2 = bn(conv3x3(h1, w2_ref), g2_ref[...], be2_ref[...])
    o_ref[...] = leaky(h2 + x)                         # residual + final leaky_relu


def _band_weights(w_oihw, width):
    """(Cout, Cin, 3, 3) conv weight -> (3*W*Cin, W*Cout) block-banded matrix.

    Row index = ky*W*C + win*C + ci, col index = wout*C + co, value =
    w[co, ci, ky, win - wout + 1] when the kx tap is in range, else 0 (W zero padding).
    Row-block order matches the in-kernel concat order [row h-1, row h, row h+1].
    """
    c = w_oihw.shape[0]
    wt = jnp.transpose(w_oihw, (2, 3, 1, 0)).astype(jnp.float32)        # (ky, kx, Ci, Co)
    win = jnp.arange(width)[:, None]
    wout = jnp.arange(width)[None, :]
    kx = win - wout + 1                                                 # (W, W)
    valid = ((kx >= 0) & (kx <= 2)).astype(jnp.float32)
    blocks = wt[:, jnp.clip(kx, 0, 2)] * valid[None, :, :, None, None]  # (3,W,W,Ci,Co)
    band = jnp.transpose(blocks, (0, 1, 3, 2, 4)).reshape(3, width * c, width * c)
    return band.reshape(3 * width * c, width * c)


def prepare_resnet_block_params(params, width):
    """One-time (out of the per-call path) parameter transformation.

    Conv biases are dropped: training-mode BatchNorm's batch-mean subtraction cancels a
    per-channel constant exactly.  BN gamma/beta are pre-broadcast to the 128-lane layout.
    """
    w1, b1, g1, be1, w2, b2, g2, be2 = params
    del b1, b2
    c = w1.shape[0]
    lanes = lambda v: jnp.tile(v.reshape(1, c).astype(jnp.float32), (1, width))
    return (_band_weights(w1, width), _band_weights(w2, width),
            lanes(g1), lanes(be1), lanes(g2), lanes(be2))


def resnet_block_lane_dense(x2d, band1, band2, g1l, be1l, g2l, be2l,
                            *, width, chans, height):
    """Lane-dense entry point: x2d is (N*H, W*C) float32; returns the same layout.

    Chained blocks should stay in this layout so the NCHW relayout happens only once at
    network input/output.
    """
    NH, WC = x2d.shape
    vmem = pl.BlockSpec(memory_space=pltpu.MemorySpace.VMEM)
    return pl.pallas_call(
        functools.partial(_resnet_block_kernel, width=width, chans=chans, height=height),
        out_shape=jax.ShapeDtypeStruct((NH, WC), jnp.float32),
        in_specs=[vmem] * 7,
        out_specs=vmem,
    )(x2d, band1, band2, g1l, be1l, g2l, be2l)


def to_lane_dense(x_nchw):
    n, c, h, w = x_nchw.shape
    return jnp.transpose(x_nchw, (0, 2, 3, 1)).reshape(n * h, w * c).astype(jnp.float32)


def from_lane_dense(x2d, n, c, h, w):
    return jnp.transpose(x2d.reshape(n, h, w, c), (0, 3, 1, 2))


def resnet_block_pallas(x_nchw, prepared):
    """Convenience NCHW wrapper (layout glue only; all compute is in the kernel)."""
    n, c, h, w = x_nchw.shape
    out2d = resnet_block_lane_dense(to_lane_dense(x_nchw), *prepared,
                                    width=w, chans=c, height=h)
    return from_lane_dense(out2d, n, c, h, w)


def resnet_block_ref(x_nchw, params):
    """Pure-JAX reference matching the PyTorch forward (training-mode BN, with biases)."""
    w1, b1, g1, be1, w2, b2, g2, be2 = params

    def conv(x, w, b):
        y = jax.lax.conv_general_dilated(
            x, w, window_strides=(1, 1), padding=((1, 1), (1, 1)),
            dimension_numbers=("NCHW", "OIHW", "NCHW"))
        return y + b[None, :, None, None]

    def bn(x, g, beta):
        mean = jnp.mean(x, axis=(0, 2, 3), keepdims=True)
        var = jnp.mean((x - mean) ** 2, axis=(0, 2, 3), keepdims=True)
        return ((x - mean) / jnp.sqrt(var + EPS)) * g[None, :, None, None] \
               + beta[None, :, None, None]

    leaky = lambda z: jnp.where(z > 0, z, NEG_SLOPE * z)
    h = leaky(bn(conv(x_nchw, w1, b1), g1, be1))
    h = bn(conv(h, w2, b2), g2, be2) + x_nchw
    return leaky(h)


if __name__ == "__main__":
    # in_channels == out_channels is required by the residual add; W*C = 128 lane-dense.
    N, C, H, W = 2, 8, 16, 16

    key = jax.random.PRNGKey(0)
    k_x, k_w1, k_b1, k_w2, k_b2, k_g1, k_be1, k_g2, k_be2 = jax.random.split(key, 9)

    bound = 1.0 / jnp.sqrt(jnp.float32(C * 9))
    w1 = jax.random.uniform(k_w1, (C, C, 3, 3), jnp.float32, -bound, bound)
    b1 = jax.random.uniform(k_b1, (C,), jnp.float32, -bound, bound)
    w2 = jax.random.uniform(k_w2, (C, C, 3, 3), jnp.float32, -bound, bound)
    b2 = jax.random.uniform(k_b2, (C,), jnp.float32, -bound, bound)
    g1 = jax.random.uniform(k_g1, (C,), jnp.float32, 0.5, 1.5)
    be1 = 0.1 * jax.random.normal(k_be1, (C,), jnp.float32)
    g2 = jax.random.uniform(k_g2, (C,), jnp.float32, 0.5, 1.5)
    be2 = 0.1 * jax.random.normal(k_be2, (C,), jnp.float32)
    params = (w1, b1, g1, be1, w2, b2, g2, be2)

    x = jax.random.normal(k_x, (N, C, H, W), jnp.float32)

    # One-time param prep (band weights, lane-broadcast BN params) — out of per-call path.
    prepared = prepare_resnet_block_params(params, W)

    # Jit only the lane-dense core; layout conversion happens once at the boundary.
    block_fn = jax.jit(functools.partial(resnet_block_lane_dense,
                                         width=W, chans=C, height=H))
    x2d = to_lane_dense(x)
    out2d = jax.block_until_ready(block_fn(x2d, *prepared))
    out = from_lane_dense(out2d, N, C, H, W)

    ref = resnet_block_ref(x, params)
    assert out.shape == (N, C, H, W)
    err = jnp.max(jnp.abs(out - ref))
    assert jnp.allclose(out, ref, rtol=2e-4, atol=2e-4), f"max abs err {err}"

    print("KERNEL_OK")
</pallas_src>

<mosaic_0001>
module attributes {stable_mosaic.version = 11 : i64} {
  func.func @_resnet_block_kernel(%arg0: memref<32x128xf32, #tpu.memory_space<vmem>>, %arg1: memref<384x128xf32, #tpu.memory_space<vmem>>, %arg2: memref<384x128xf32, #tpu.memory_space<vmem>>, %arg3: memref<1x128xf32, #tpu.memory_space<vmem>>, %arg4: memref<1x128xf32, #tpu.memory_space<vmem>>, %arg5: memref<1x128xf32, #tpu.memory_space<vmem>>, %arg6: memref<1x128xf32, #tpu.memory_space<vmem>>, %arg7: memref<32x128xf32, #tpu.memory_space<vmem>>) attributes {dimension_semantics = [], scalar_prefetch = 0 : i64, scratch_operands = 0 : i64, tpu.core_type = #tpu.core_type<tc>} {
    %0 = tpu.iota {dimensions = array<i32: 0>} : vector<32x128xi32>
    %c16_i32 = arith.constant 16 : i32
    %c0_i32 = arith.constant 0 : i32
    %1 = arith.cmpi eq, %c16_i32, %c0_i32 : i32
    %c1_i32 = arith.constant 1 : i32
    %2 = arith.select %1, %c1_i32, %c16_i32 : i32
    %3 = vector.broadcast %2 : i32 to vector<32x128xi32>
    %4 = arith.remsi %0, %3 : vector<32x128xi32>
    %c0_i32_0 = arith.constant 0 : i32
    %5 = vector.broadcast %c0_i32_0 : i32 to vector<32x128xi32>
    %6 = arith.cmpi ne, %4, %5 : vector<32x128xi32>
    %c0_i32_1 = arith.constant 0 : i32
    %7 = vector.broadcast %c0_i32_1 : i32 to vector<32x128xi32>
    %8 = arith.cmpi slt, %4, %7 : vector<32x128xi32>
    %c0_i32_2 = arith.constant 0 : i32
    %9 = arith.cmpi slt, %2, %c0_i32_2 : i32
    %10 = vector.broadcast %9 : i1 to vector<32x128xi1>
    %11 = vector.broadcast %10 : vector<32x128xi1> to vector<32x128xi1>
    %12 = arith.xori %8, %11 : vector<32x128xi1>
    %13 = arith.andi %12, %6 : vector<32x128xi1>
    %14 = vector.broadcast %2 : i32 to vector<32x128xi32>
    %15 = arith.addi %4, %14 : vector<32x128xi32>
    %16 = arith.select %13, %15, %4 : vector<32x128xi1>, vector<32x128xi32>
    %c0_i32_3 = arith.constant 0 : i32
    %17 = vector.broadcast %c0_i32_3 : i32 to vector<32x128xi32>
    %18 = arith.cmpi ne, %16, %17 : vector<32x128xi32>
    %c15_i32 = arith.constant 15 : i32
    %19 = vector.broadcast %c15_i32 : i32 to vector<32x128xi32>
    %20 = arith.cmpi ne, %16, %19 : vector<32x128xi32>
    %c0 = arith.constant 0 : index
    %c0_4 = arith.constant 0 : index
    %21 = vector.load %arg0[%c0, %c0_4] : memref<32x128xf32, #tpu.memory_space<vmem>>, vector<32x128xf32>
    %c1_i32_5 = arith.constant 1 : i32
    %22 = tpu.dynamic_rotate %21 by %c1_i32_5 dim 0 : vector<32x128xf32>, i32 -> vector<32x128xf32>
    %cst = arith.constant 0.000000e+00 : f32
    %23 = vector.broadcast %cst : f32 to vector<32x128xf32>
    %24 = arith.select %18, %22, %23 : vector<32x128xi1>, vector<32x128xf32>
    %c31_i32 = arith.constant 31 : i32
    %25 = tpu.dynamic_rotate %21 by %c31_i32 dim 0 : vector<32x128xf32>, i32 -> vector<32x128xf32>
    %cst_6 = arith.constant 0.000000e+00 : f32
    %26 = vector.broadcast %cst_6 : f32 to vector<32x128xf32>
    %27 = arith.select %20, %25, %26 : vector<32x128xi1>, vector<32x128xf32>
    %28 = tpu.concatenate %24, %21, %27 in 1 : vector<32x128xf32>, vector<32x128xf32>, vector<32x128xf32> -> vector<32x384xf32>
    %c0_7 = arith.constant 0 : index
    %c0_8 = arith.constant 0 : index
    %29 = vector.load %arg1[%c0_7, %c0_8] : memref<384x128xf32, #tpu.memory_space<vmem>>, vector<384x128xf32>
    %cst_9 = arith.constant dense<0.000000e+00> : vector<32x128xf32>
    %30 = tpu.matmul %28, %29, %cst_9 {dimension_numbers = #tpu.dot_dimension_numbers<[1], [0], [0], [1], [0, 0, 1, 1], [], []>} : vector<32x384xf32>, vector<384x128xf32>, vector<32x128xf32> -> vector<32x128xf32>
    %c0_10 = arith.constant 0 : index
    %c0_11 = arith.constant 0 : index
    %31 = vector.load %arg3[%c0_10, %c0_11] : memref<1x128xf32, #tpu.memory_space<vmem>>, vector<1x128xf32>
    %c0_12 = arith.constant 0 : index
    %c0_13 = arith.constant 0 : index
    %32 = vector.load %arg4[%c0_12, %c0_13] : memref<1x128xf32, #tpu.memory_space<vmem>>, vector<1x128xf32>
    %cst_14 = arith.constant dense<0.000000e+00> : vector<128xf32>
    %33 = vector.multi_reduction <add>, %30, %cst_14 [0] : vector<32x128xf32> to vector<128xf32>
    %34 = vector.shape_cast %33 : vector<128xf32> to vector<1x128xf32>
    %35 = arith.mulf %30, %30 : vector<32x128xf32>
    %cst_15 = arith.constant dense<0.000000e+00> : vector<128xf32>
    %36 = vector.multi_reduction <add>, %35, %cst_15 [0] : vector<32x128xf32> to vector<128xf32>
    %37 = vector.shape_cast %36 : vector<128xf32> to vector<1x128xf32>
    %c8_i32 = arith.constant 8 : i32
    %38 = tpu.dynamic_rotate %34 by %c8_i32 dim 1 : vector<1x128xf32>, i32 -> vector<1x128xf32>
    %39 = arith.addf %34, %38 : vector<1x128xf32>
    %c16_i32_16 = arith.constant 16 : i32
    %40 = tpu.dynamic_rotate %39 by %c16_i32_16 dim 1 : vector<1x128xf32>, i32 -> vector<1x128xf32>
    %41 = arith.addf %39, %40 : vector<1x128xf32>
    %c32_i32 = arith.constant 32 : i32
    %42 = tpu.dynamic_rotate %41 by %c32_i32 dim 1 : vector<1x128xf32>, i32 -> vector<1x128xf32>
    %43 = arith.addf %41, %42 : vector<1x128xf32>
    %c64_i32 = arith.constant 64 : i32
    %44 = tpu.dynamic_rotate %43 by %c64_i32 dim 1 : vector<1x128xf32>, i32 -> vector<1x128xf32>
    %45 = arith.addf %43, %44 : vector<1x128xf32>
    %cst_17 = arith.constant 0.001953125 : f32
    %46 = vector.broadcast %cst_17 : f32 to vector<1x128xf32>
    %47 = arith.mulf %45, %46 : vector<1x128xf32>
    %c8_i32_18 = arith.constant 8 : i32
    %48 = tpu.dynamic_rotate %37 by %c8_i32_18 dim 1 : vector<1x128xf32>, i32 -> vector<1x128xf32>
    %49 = arith.addf %37, %48 : vector<1x128xf32>
    %c16_i32_19 = arith.constant 16 : i32
    %50 = tpu.dynamic_rotate %49 by %c16_i32_19 dim 1 : vector<1x128xf32>, i32 -> vector<1x128xf32>
    %51 = arith.addf %49, %50 : vector<1x128xf32>
    %c32_i32_20 = arith.constant 32 : i32
    %52 = tpu.dynamic_rotate %51 by %c32_i32_20 dim 1 : vector<1x128xf32>, i32 -> vector<1x128xf32>
    %53 = arith.addf %51, %52 : vector<1x128xf32>
    %c64_i32_21 = arith.constant 64 : i32
    %54 = tpu.dynamic_rotate %53 by %c64_i32_21 dim 1 : vector<1x128xf32>, i32 -> vector<1x128xf32>
    %55 = arith.addf %53, %54 : vector<1x128xf32>
    %cst_22 = arith.constant 0.001953125 : f32
    %56 = vector.broadcast %cst_22 : f32 to vector<1x128xf32>
    %57 = arith.mulf %55, %56 : vector<1x128xf32>
    %58 = arith.mulf %47, %47 : vector<1x128xf32>
    %59 = arith.subf %57, %58 : vector<1x128xf32>
    %cst_23 = arith.constant 9.99999974E-6 : f32
    %60 = vector.broadcast %cst_23 : f32 to vector<1x128xf32>
    %61 = arith.addf %59, %60 : vector<1x128xf32>
    %62 = math.rsqrt %61 : vector<1x128xf32>
    %63 = arith.mulf %31, %62 : vector<1x128xf32>
    %64 = arith.mulf %47, %63 : vector<1x128xf32>
    %65 = arith.subf %32, %64 : vector<1x128xf32>
    %66 = vector.broadcast %63 : vector<1x128xf32> to vector<32x128xf32>
    %67 = arith.mulf %30, %66 : vector<32x128xf32>
    %68 = vector.broadcast %65 : vector<1x128xf32> to vector<32x128xf32>
    %69 = arith.addf %67, %68 : vector<32x128xf32>
    %cst_24 = arith.constant 0.00999999977 : f32
    %70 = vector.broadcast %cst_24 : f32 to vector<32x128xf32>
    %71 = arith.mulf %70, %69 : vector<32x128xf32>
    %72 = arith.maximumf %69, %71 : vector<32x128xf32>
    %c1_i32_25 = arith.constant 1 : i32
    %73 = tpu.dynamic_rotate %72 by %c1_i32_25 dim 0 : vector<32x128xf32>, i32 -> vector<32x128xf32>
    %cst_26 = arith.constant 0.000000e+00 : f32
    %74 = vector.broadcast %cst_26 : f32 to vector<32x128xf32>
    %75 = arith.select %18, %73, %74 : vector<32x128xi1>, vector<32x128xf32>
    %c31_i32_27 = arith.constant 31 : i32
    %76 = tpu.dynamic_rotate %72 by %c31_i32_27 dim 0 : vector<32x128xf32>, i32 -> vector<32x128xf32>
    %cst_28 = arith.constant 0.000000e+00 : f32
    %77 = vector.broadcast %cst_28 : f32 to vector<32x128xf32>
    %78 = arith.select %20, %76, %77 : vector<32x128xi1>, vector<32x128xf32>
    %79 = tpu.concatenate %75, %72, %78 in 1 : vector<32x128xf32>, vector<32x128xf32>, vector<32x128xf32> -> vector<32x384xf32>
    %c0_29 = arith.constant 0 : index
    %c0_30 = arith.constant 0 : index
    %80 = vector.load %arg2[%c0_29, %c0_30] : memref<384x128xf32, #tpu.memory_space<vmem>>, vector<384x128xf32>
    %cst_31 = arith.constant dense<0.000000e+00> : vector<32x128xf32>
    %81 = tpu.matmul %79, %80, %cst_31 {dimension_numbers = #tpu.dot_dimension_numbers<[1], [0], [0], [1], [0, 0, 1, 1], [], []>} : vector<32x384xf32>, vector<384x128xf32>, vector<32x128xf32> -> vector<32x128xf32>
    %c0_32 = arith.constant 0 : index
    %c0_33 = arith.constant 0 : index
    %82 = vector.load %arg5[%c0_32, %c0_33] : memref<1x128xf32, #tpu.memory_space<vmem>>, vector<1x128xf32>
    %c0_34 = arith.constant 0 : index
    %c0_35 = arith.constant 0 : index
    %83 = vector.load %arg6[%c0_34, %c0_35] : memref<1x128xf32, #tpu.memory_space<vmem>>, vector<1x128xf32>
    %cst_36 = arith.constant dense<0.000000e+00> : vector<128xf32>
    %84 = vector.multi_reduction <add>, %81, %cst_36 [0] : vector<32x128xf32> to vector<128xf32>
    %85 = vector.shape_cast %84 : vector<128xf32> to vector<1x128xf32>
    %86 = arith.mulf %81, %81 : vector<32x128xf32>
    %cst_37 = arith.constant dense<0.000000e+00> : vector<128xf32>
    %87 = vector.multi_reduction <add>, %86, %cst_37 [0] : vector<32x128xf32> to vector<128xf32>
    %88 = vector.shape_cast %87 : vector<128xf32> to vector<1x128xf32>
    %c8_i32_38 = arith.constant 8 : i32
    %89 = tpu.dynamic_rotate %85 by %c8_i32_38 dim 1 : vector<1x128xf32>, i32 -> vector<1x128xf32>
    %90 = arith.addf %85, %89 : vector<1x128xf32>
    %c16_i32_39 = arith.constant 16 : i32
    %91 = tpu.dynamic_rotate %90 by %c16_i32_39 dim 1 : vector<1x128xf32>, i32 -> vector<1x128xf32>
    %92 = arith.addf %90, %91 : vector<1x128xf32>
    %c32_i32_40 = arith.constant 32 : i32
    %93 = tpu.dynamic_rotate %92 by %c32_i32_40 dim 1 : vector<1x128xf32>, i32 -> vector<1x128xf32>
    %94 = arith.addf %92, %93 : vector<1x128xf32>
    %c64_i32_41 = arith.constant 64 : i32
    %95 = tpu.dynamic_rotate %94 by %c64_i32_41 dim 1 : vector<1x128xf32>, i32 -> vector<1x128xf32>
    %96 = arith.addf %94, %95 : vector<1x128xf32>
    %cst_42 = arith.constant 0.001953125 : f32
    %97 = vector.broadcast %cst_42 : f32 to vector<1x128xf32>
    %98 = arith.mulf %96, %97 : vector<1x128xf32>
    %c8_i32_43 = arith.constant 8 : i32
    %99 = tpu.dynamic_rotate %88 by %c8_i32_43 dim 1 : vector<1x128xf32>, i32 -> vector<1x128xf32>
    %100 = arith.addf %88, %99 : vector<1x128xf32>
    %c16_i32_44 = arith.constant 16 : i32
    %101 = tpu.dynamic_rotate %100 by %c16_i32_44 dim 1 : vector<1x128xf32>, i32 -> vector<1x128xf32>
    %102 = arith.addf %100, %101 : vector<1x128xf32>
    %c32_i32_45 = arith.constant 32 : i32
    %103 = tpu.dynamic_rotate %102 by %c32_i32_45 dim 1 : vector<1x128xf32>, i32 -> vector<1x128xf32>
    %104 = arith.addf %102, %103 : vector<1x128xf32>
    %c64_i32_46 = arith.constant 64 : i32
    %105 = tpu.dynamic_rotate %104 by %c64_i32_46 dim 1 : vector<1x128xf32>, i32 -> vector<1x128xf32>
    %106 = arith.addf %104, %105 : vector<1x128xf32>
    %cst_47 = arith.constant 0.001953125 : f32
    %107 = vector.broadcast %cst_47 : f32 to vector<1x128xf32>
    %108 = arith.mulf %106, %107 : vector<1x128xf32>
    %109 = arith.mulf %98, %98 : vector<1x128xf32>
    %110 = arith.subf %108, %109 : vector<1x128xf32>
    %cst_48 = arith.constant 9.99999974E-6 : f32
    %111 = vector.broadcast %cst_48 : f32 to vector<1x128xf32>
    %112 = arith.addf %110, %111 : vector<1x128xf32>
    %113 = math.rsqrt %112 : vector<1x128xf32>
    %114 = arith.mulf %82, %113 : vector<1x128xf32>
    %115 = arith.mulf %98, %114 : vector<1x128xf32>
    %116 = arith.subf %83, %115 : vector<1x128xf32>
    %117 = vector.broadcast %114 : vector<1x128xf32> to vector<32x128xf32>
    %118 = arith.mulf %81, %117 : vector<32x128xf32>
    %119 = vector.broadcast %116 : vector<1x128xf32> to vector<32x128xf32>
    %120 = arith.addf %118, %119 : vector<32x128xf32>
    %121 = arith.addf %120, %21 : vector<32x128xf32>
    %cst_49 = arith.constant 0.00999999977 : f32
    %122 = vector.broadcast %cst_49 : f32 to vector<32x128xf32>
    %123 = arith.mulf %122, %121 : vector<32x128xf32>
    %124 = arith.maximumf %121, %123 : vector<32x128xf32>
    %c0_50 = arith.constant 0 : index
    %c0_51 = arith.constant 0 : index
    %125 = vector.load %arg7[%c0_50, %c0_51] : memref<32x128xf32, #tpu.memory_space<vmem>>, vector<32x128xf32>
    tpu.vector_store %arg7[%c0_50, %c0_51], %124 {strides = array<i32>} : memref<32x128xf32, #tpu.memory_space<vmem>>, vector<32x128xf32>,
    return
  }
}

</mosaic_0001>

<llo_original>
// kernel: resnet_block_lane_dense.1
$region0: #{resnet_block_lane_dense.1}
  #allocation0 [shape = 'u32[]', space=smem, size = 0x4, offset = 0x4, fixed_abs, tag = 'smem constant byte address 0x4 - core index']
  #allocation1 [shape = 'u32[144,128]{1,0:T(1,128)}', space=vmem, size = 0x12000, scoped, tag = 'internal scratch']
  %s0 = inlined_call_operand.hbm [shape: f32[32,128], index: 0, kind: input, shape index: {}]
  %s1 = inlined_call_operand.hbm [shape: f32[384,128], index: 1, kind: input, shape index: {}]
  %s2 = inlined_call_operand.hbm [shape: f32[384,128], index: 2, kind: input, shape index: {}]
  %s3 = inlined_call_operand.vmem [shape: f32[1,128], index: 3, kind: input, shape index: {}]
  %s4 = inlined_call_operand.vmem [shape: f32[1,128], index: 4, kind: input, shape index: {}]
  %s5 = inlined_call_operand.vmem [shape: f32[1,128], index: 5, kind: input, shape index: {}]
  %s6 = inlined_call_operand.vmem [shape: f32[1,128], index: 6, kind: input, shape index: {}]
  %s7 = inlined_call_operand.hbm [shape: f32[32,128], index: 7, kind: output, shape index: {}]
  %s8 = sld [smem:[#allocation0]]
  $region50: #{resnet_block_lane_dense.1} parent=0
    _
  %s10 = ssub.s32 1, %s8
  %s11 = scalar_select 0, %s10, %s8
  $region1: #{resnet_block_lane_dense.1} parent=0
    #allocation2 [shape = 'u8[16384]{0}', space=vmem, size = 0x4000, scoped, tag = 'input window, operand 0, single buffered']
    #allocation3 [shape = 's32[1]{0}', space=sflag, size = 0x4, scoped, tag = 'scoped memory for resnet_block_lane_dense.1']
    #allocation4 [shape = 's32[1]{0}', space=sflag, size = 0x4, scoped, tag = 'scoped memory for resnet_block_lane_dense.1']
    #allocation5 [shape = 'u8[196608]{0}', space=vmem, size = 0x30000, scoped, tag = 'input window, operand 1, single buffered']
    #allocation6 [shape = 's32[1]{0}', space=sflag, size = 0x4, scoped, tag = 'scoped memory for resnet_block_lane_dense.1']
    #allocation7 [shape = 'u8[196608]{0}', space=vmem, size = 0x30000, scoped, tag = 'input window, operand 2, single buffered']
    #allocation8 [shape = 'u8[16384]{0}', space=vmem, size = 0x4000, scoped, tag = 'output window, operand 0, single buffered']
    %12 = vsyncpa [#allocation3], 0
    %13 = vsyncpa [#allocation6], 0
    %14 = vsyncpa [#allocation4], 0
    // Predicated region
    $region2: #{resnet_block_lane_dense.1} parent=1 // pred_check
      _
    $region3: #{resnet_block_lane_dense.1} parent=1 // pred_check_branch
      %16 = sbr.rel (0) target = $region5
    $region4: #{resnet_block_lane_dense.1} parent=1 // pred_region
      %s18 = ssub.s32 512, 512
      %19 = vsyncadd [#allocation3], %s18
      %s20 = sshll.u32 [#allocation2], 4
      %s21 = int_to_ptr.vmem [resolvable:$true] %s20
      %26 = dma.hbm_to_vmem [thread:$0]  %s0, 512, %s21, [#allocation3], 128, 128, 8
    $region5: #{resnet_block_lane_dense.1} parent=1 // pred_fallthru
      _
    // Predicated region
    $region6: #{resnet_block_lane_dense.1} parent=1 // pred_check
      _
    $region7: #{resnet_block_lane_dense.1} parent=1 // pred_check_branch
      %28 = sbr.rel (0) target = $region9
    $region8: #{resnet_block_lane_dense.1} parent=1 // pred_region
      %s30 = ssub.s32 6144, 6144
      %31 = vsyncadd [#allocation6], %s30
      %s32 = sshll.u32 [#allocation5], 4
      %s33 = int_to_ptr.vmem [resolvable:$true] %s32
      %38 = dma.hbm_to_vmem [thread:$0]  %s1, 6144, %s33, [#allocation6], 128, 128, 8
    $region9: #{resnet_block_lane_dense.1} parent=1 // pred_fallthru
      _
    // Predicated region
    $region10: #{resnet_block_lane_dense.1} parent=1 // pred_check
      _
    $region11: #{resnet_block_lane_dense.1} parent=1 // pred_check_branch
      %40 = sbr.rel (0) target = $region13
    $region12: #{resnet_block_lane_dense.1} parent=1 // pred_region
      %s42 = ssub.s32 6144, 6144
      %43 = vsyncadd [#allocation6], %s42
      %s44 = sshll.u32 [#allocation7], 4
      %s45 = int_to_ptr.vmem [resolvable:$true] %s44
      %50 = dma.hbm_to_vmem [thread:$0]  %s2, 6144, %s45, [#allocation6], 128, 128, 8
    $region13: #{resnet_block_lane_dense.1} parent=1 // pred_fallthru
      _
    // Predicated region
    $region14: #{resnet_block_lane_dense.1} parent=1 // pred_check
      _
    $region15: #{resnet_block_lane_dense.1} parent=1 // pred_check_branch
      %52 = sbr.rel (0) target = $region17
    $region16: #{resnet_block_lane_dense.1} parent=1 // pred_region
      _
    $region17: #{resnet_block_lane_dense.1} parent=1 // pred_fallthru
      _
    // Predicated region
    $region18: #{resnet_block_lane_dense.1} parent=1 // pred_check
      _
    $region19: #{resnet_block_lane_dense.1} parent=1 // pred_check_branch
      %54 = sbr.rel (0) target = $region21
    $region20: #{resnet_block_lane_dense.1} parent=1 // pred_region
      _
    $region21: #{resnet_block_lane_dense.1} parent=1 // pred_fallthru
      _
    // Predicated region
    $region22: #{resnet_block_lane_dense.1} parent=1 // pred_check
      _
    $region23: #{resnet_block_lane_dense.1} parent=1 // pred_check_branch
      %56 = sbr.rel (0) target = $region25
    $region24: #{resnet_block_lane_dense.1} parent=1 // pred_region
      _
    $region25: #{resnet_block_lane_dense.1} parent=1 // pred_fallthru
      _
    // Predicated region
    $region26: #{resnet_block_lane_dense.1} parent=1 // pred_check
      _
    $region27: #{resnet_block_lane_dense.1} parent=1 // pred_check_branch
      %58 = sbr.rel (0) target = $region29
    $region28: #{resnet_block_lane_dense.1} parent=1 // pred_region
      _
    $region29: #{resnet_block_lane_dense.1} parent=1 // pred_fallthru
      _
    // Predicated region
    $region30: #{resnet_block_lane_dense.1} parent=1 // pred_check
      _
    $region31: #{resnet_block_lane_dense.1} parent=1 // pred_check_branch
      %60 = sbr.rel (0) target = $region33
    $region32: #{resnet_block_lane_dense.1} parent=1 // pred_region
      %61 = dma.done [#allocation3], 512
    $region33: #{resnet_block_lane_dense.1} parent=1 // pred_fallthru
      _
    // Predicated region
    $region34: #{resnet_block_lane_dense.1} parent=1 // pred_check
      _
    $region35: #{resnet_block_lane_dense.1} parent=1 // pred_check_branch
      %63 = sbr.rel (0) target = $region37
    $region36: #{resnet_block_lane_dense.1} parent=1 // pred_region
      %64 = dma.done [#allocation6], 6144
    $region37: #{resnet_block_lane_dense.1} parent=1 // pred_fallthru
      _
    // Predicated region
    $region38: #{resnet_block_lane_dense.1} parent=1 // pred_check
      _
    $region39: #{resnet_block_lane_dense.1} parent=1 // pred_check_branch
      %66 = sbr.rel (0) target = $region41
    $region40: #{resnet_block_lane_dense.1} parent=1 // pred_region
      %67 = dma.done [#allocation6], 6144
    $region41: #{resnet_block_lane_dense.1} parent=1 // pred_fallthru
      _
    %v68 = vlaneseq
    %v69 = vshrl.u32 %v68, 7
    %v70 = vadd.s32 %v69, 8
    %v71 = vadd.s32 %v69, 16
    %v72 = vadd.s32 %v69, 24
    %vm73 = vcmp.lt.s32.totalorder %v69, 0
    %v74 = vsub.s32 0, %v69
    %v75 = vsel %vm73, %v74, %v69
    %v76 = vshrl.u32 %v75, 4
    %v77 = vand.u32 %v75, 15
    %v78 = vsub.s32 0, %v77
    %v79 = vsel %vm73, %v78, %v77
    %vm80 = vcmp.lt.s32.totalorder %v70, 0
    %v81 = vsub.s32 0, %v70
    %v82 = vsel %vm80, %v81, %v70
    %v83 = vshrl.u32 %v82, 4
    %v84 = vand.u32 %v82, 15
    %v85 = vsub.s32 0, %v84
    %v86 = vsel %vm80, %v85, %v84
    %vm87 = vcmp.lt.s32.totalorder %v71, 0
    %v88 = vsub.s32 0, %v71
    %v89 = vsel %vm87, %v88, %v71
    %v90 = vshrl.u32 %v89, 4
    %v91 = vand.u32 %v89, 15
    %v92 = vsub.s32 0, %v91
    %v93 = vsel %vm87, %v92, %v91
    %vm94 = vcmp.lt.s32.totalorder %v72, 0
    %v95 = vsub.s32 0, %v72
    %v96 = vsel %vm94, %v95, %v72
    %v97 = vshrl.u32 %v96, 4
    %v98 = vand.u32 %v96, 15
    %v99 = vsub.s32 0, %v98
    %v100 = vsel %vm94, %v99, %v98
    %vm101 = vcmp.ne.s32.totalorder %v79, 0
    %vm102 = vcmp.ne.s32.totalorder %v86, 0
    %vm103 = vcmp.ne.s32.totalorder %v93, 0
    %vm104 = vcmp.ne.s32.totalorder %v100, 0
    %vm105 = vcmp.lt.s32.totalorder %v79, 0
    %vm106 = vcmp.lt.s32.totalorder %v86, 0
    %vm107 = vcmp.lt.s32.totalorder %v93, 0
    %vm108 = vcmp.lt.s32.totalorder %v100, 0
    %vm109 = vmand %vm105, %vm101
    %vm110 = vmand %vm106, %vm102
    %vm111 = vmand %vm107, %vm103
    %vm112 = vmand %vm108, %vm104
    %v113 = vadd.s32 %v79, 16
    %v114 = vadd.s32 %v86, 16
    %v115 = vadd.s32 %v93, 16
    %v116 = vadd.s32 %v100, 16
    %v117 = vsel %vm109, %v113, %v79
    %v118 = vsel %vm110, %v114, %v86
    %v119 = vsel %vm111, %v115, %v93
    %v120 = vsel %vm112, %v116, %v100
    %vm121 = vcmp.ne.s32.totalorder %v117, 0
    %vm122 = vcmp.ne.s32.totalorder %v118, 0
    %vm123 = vcmp.ne.s32.totalorder %v119, 0
    %vm124 = vcmp.ne.s32.totalorder %v120, 0
    %vm125 = vcmp.ne.s32.totalorder %v117, 15
    %vm126 = vcmp.ne.s32.totalorder %v118, 15
    %vm127 = vcmp.ne.s32.totalorder %v119, 15
    %vm128 = vcmp.ne.s32.totalorder %v120, 15
    %v129 = vld [vmem:[#allocation2] sm:$0xff]
    %v130 = vld [vmem:[#allocation2 + $0x8] sm:$0xff]
    %v131 = vld [vmem:[#allocation2 + $0x10] sm:$0xff]
    %v132 = vld [vmem:[#allocation2 + $0x18] sm:$0xff]
    %v133 = vrot.slane %v129, 7
    %v134 = vrot.slane %v130, 7
    %v135 = vrot.slane %v131, 7
    %v136 = vrot.slane %v132, 7
    %vm137 = vcmp.lt.s32.totalorder %v69, 1
    %v138 = vsel %vm137, %v135, %v136
    %v139 = vsel %vm137, %v134, %v135
    %v140 = vsel %vm137, %v133, %v134
    %v141 = vsel %vm137, %v136, %v133
    %v142 = vsel %vm121, %v141, 0.0
    %v143 = vsel %vm122, %v140, 0.0
    %v144 = vsel %vm123, %v139, 0.0
    %v145 = vsel %vm124, %v138, 0.0
    %v146 = vrot.slane %v129, 1
    %v147 = vrot.slane %v130, 1
    %v148 = vrot.slane %v131, 1
    %v149 = vrot.slane %v132, 1
    %vm150 = vcmp.lt.s32.totalorder %v69, 7
    %v151 = vsel %vm150, %v148, %v149
    %v152 = vsel %vm150, %v147, %v148
    %v153 = vsel %vm150, %v146, %v147
    %v154 = vsel %vm150, %v149, %v146
    %v155 = vsel %vm125, %v153, 0.0
    %v156 = vsel %vm126, %v152, 0.0
    %v157 = vsel %vm127, %v151, 0.0
    %v158 = vsel %vm128, %v154, 0.0
    %v159 = vld [vmem:[#allocation5] sm:$0xff]
    %v160 = vld [vmem:[#allocation5 + $0x8] sm:$0xff]
    %v161 = vld [vmem:[#allocation5 + $0x10] sm:$0xff]
    %v162 = vld [vmem:[#allocation5 + $0x18] sm:$0xff]
    %v163 = vld [vmem:[#allocation5 + $0x20] sm:$0xff]
    %v164 = vld [vmem:[#allocation5 + $0x28] sm:$0xff]
    %v165 = vld [vmem:[#allocation5 + $0x30] sm:$0xff]
    %v166 = vld [vmem:[#allocation5 + $0x38] sm:$0xff]
    %v167 = vld [vmem:[#allocation5 + $0x40] sm:$0xff]
    %v168 = vld [vmem:[#allocation5 + $0x48] sm:$0xff]
    %v169 = vld [vmem:[#allocation5 + $0x50] sm:$0xff]
    %v170 = vld [vmem:[#allocation5 + $0x58] sm:$0xff]
    %v171 = vld [vmem:[#allocation5 + $0x60] sm:$0xff]
    %v172 = vld [vmem:[#allocation5 + $0x68] sm:$0xff]
    %v173 = vld [vmem:[#allocation5 + $0x70] sm:$0xff]
    %v174 = vld [vmem:[#allocation5 + $0x78] sm:$0xff]
    %v175 = vld [vmem:[#allocation5 + $0x80] sm:$0xff]
    %v176 = vld [vmem:[#allocation5 + $0x88] sm:$0xff]
    %v177 = vld [vmem:[#allocation5 + $0x90] sm:$0xff]
    %v178 = vld [vmem:[#allocation5 + $0x98] sm:$0xff]
    %v179 = vld [vmem:[#allocation5 + $0xa0] sm:$0xff]
    %v180 = vld [vmem:[#allocation5 + $0xa8] sm:$0xff]
    %v181 = vld [vmem:[#allocation5 + $0xb0] sm:$0xff]
    %v182 = vld [vmem:[#allocation5 + $0xb8] sm:$0xff]
    %v183 = vld [vmem:[#allocation5 + $0xc0] sm:$0xff]
    %v184 = vld [vmem:[#allocation5 + $0xc8] sm:$0xff]
    %v185 = vld [vmem:[#allocation5 + $0xd0] sm:$0xff]
    %v186 = vld [vmem:[#allocation5 + $0xd8] sm:$0xff]
    %v187 = vld [vmem:[#allocation5 + $0xe0] sm:$0xff]
    %v188 = vld [vmem:[#allocation5 + $0xe8] sm:$0xff]
    %v189 = vld [vmem:[#allocation5 + $0xf0] sm:$0xff]
    %v190 = vld [vmem:[#allocation5 + $0xf8] sm:$0xff]
    %v191 = vld [vmem:[#allocation5 + $0x100] sm:$0xff]
    %v192 = vld [vmem:[#allocation5 + $0x108] sm:$0xff]
    %v193 = vld [vmem:[#allocation5 + $0x110] sm:$0xff]
    %v194 = vld [vmem:[#allocation5 + $0x118] sm:$0xff]
    %v195 = vld [vmem:[#allocation5 + $0x120] sm:$0xff]
    %v196 = vld [vmem:[#allocation5 + $0x128] sm:$0xff]
    %v197 = vld [vmem:[#allocation5 + $0x130] sm:$0xff]
    %v198 = vld [vmem:[#allocation5 + $0x138] sm:$0xff]
    %v199 = vld [vmem:[#allocation5 + $0x140] sm:$0xff]
    %v200 = vld [vmem:[#allocation5 + $0x148] sm:$0xff]
    %v201 = vld [vmem:[#allocation5 + $0x150] sm:$0xff]
    %v202 = vld [vmem:[#allocation5 + $0x158] sm:$0xff]
    %v203 = vld [vmem:[#allocation5 + $0x160] sm:$0xff]
    %v204 = vld [vmem:[#allocation5 + $0x168] sm:$0xff]
    %v205 = vld [vmem:[#allocation5 + $0x170] sm:$0xff]
    %v206 = vld [vmem:[#allocation5 + $0x178] sm:$0xff]
    %207 = vmatprep.subr.mxu0 0.0
    %208 = vmatpush1.msra.mxu0 %v174
    %209 = vmatprep.subr.mxu0 0.0
    %210 = vmatpush1.msra.mxu0 %v173
    %211 = vmatprep.subr.mxu0 0.0
    %212 = vmatpush1.msra.mxu0 %v172
    %213 = vmatprep.subr.mxu0 0.0
    %214 = vmatpush1.msra.mxu0 %v171
    %215 = vmatprep.subr.mxu0 0.0
    %216 = vmatpush1.msra.mxu0 %v170
    %217 = vmatprep.subr.mxu0 0.0
    %218 = vmatpush1.msra.mxu0 %v169
    %219 = vmatprep.subr.mxu0 0.0
    %220 = vmatpush1.msra.mxu0 %v168
    %221 = vmatprep.subr.mxu0 0.0
    %222 = vmatpush1.msra.mxu0 %v167
    %223 = vmatprep.subr.mxu0 0.0
    %224 = vmatpush1.msra.mxu0 %v166
    %225 = vmatprep.subr.mxu0 0.0
    %226 = vmatpush1.msra.mxu0 %v165
    %227 = vmatprep.subr.mxu0 0.0
    %228 = vmatpush1.msra.mxu0 %v164
    %229 = vmatprep.subr.mxu0 0.0
    %230 = vmatpush1.msra.mxu0 %v163
    %231 = vmatprep.subr.mxu0 0.0
    %232 = vmatpush1.msra.mxu0 %v162
    %233 = vmatprep.subr.mxu0 0.0
    %234 = vmatpush1.msra.mxu0 %v161
    %235 = vmatprep.subr.mxu0 0.0
    %236 = vmatpush1.msra.mxu0 %v160
    %237 = vmatprep.subr.mxu0 0.0
    %238 = vmatpush1.msra.mxu0 %v159
    %239 = vmatprep.subr.mxu0 0.0
    %240 = vmatpush2.msra.mxu0 %v190
    %241 = vmatprep.subr.mxu0 0.0
    %242 = vmatpush2.msra.mxu0 %v189
    %243 = vmatprep.subr.mxu0 0.0
    %244 = vmatpush2.msra.mxu0 %v188
    %245 = vmatprep.subr.mxu0 0.0
    %246 = vmatpush2.msra.mxu0 %v187
    %247 = vmatprep.subr.mxu0 0.0
    %248 = vmatpush2.msra.mxu0 %v186
    %249 = vmatprep.subr.mxu0 0.0
    %250 = vmatpush2.msra.mxu0 %v185
    %251 = vmatprep.subr.mxu0 0.0
    %252 = vmatpush2.msra.mxu0 %v184
    %253 = vmatprep.subr.mxu0 0.0
    %254 = vmatpush2.msra.mxu0 %v183
    %255 = vmatprep.subr.mxu0 0.0
    %256 = vmatpush2.msra.mxu0 %v182
    %257 = vmatprep.subr.mxu0 0.0
    %258 = vmatpush2.msra.mxu0 %v181
    %259 = vmatprep.subr.mxu0 0.0
    %260 = vmatpush2.msra.mxu0 %v180
    %261 = vmatprep.subr.mxu0 0.0
    %262 = vmatpush2.msra.mxu0 %v179
    %263 = vmatprep.subr.mxu0 0.0
    %264 = vmatpush2.msra.mxu0 %v178
    %265 = vmatprep.subr.mxu0 0.0
    %266 = vmatpush2.msra.mxu0 %v177
    %267 = vmatprep.subr.mxu0 0.0
    %268 = vmatpush2.msra.mxu0 %v176
    %269 = vmatprep.subr.mxu0 0.0
    %270 = vmatpush2.msra.mxu0 %v175
    %271 = vmatprep.mubr.f32.mxu0 %v129
    %272 = vmatmul.mubr.f32.gmra.mxu0 %v142
    %v273 = vpop.f32.mrf.mxu0
    %v274 = vadd.f32 0.0, %v273
    %v275 = vpop.f32.mrf.mxu0
    %276 = vmatprep.mubr.f32.mxu0 %v130
    %277 = vmatmul.mubr.f32.gmra.mxu0 %v143
    %v278 = vpop.f32.mrf.mxu0
    %v279 = vadd.f32 0.0, %v278
    %v280 = vpop.f32.mrf.mxu0
    %281 = vmatprep.mubr.f32.mxu0 %v131
    %282 = vmatmul.mubr.f32.gmra.mxu0 %v144
    %v283 = vpop.f32.mrf.mxu0
    %v284 = vadd.f32 0.0, %v283
    %v285 = vpop.f32.mrf.mxu0
    %286 = vmatprep.mubr.f32.mxu0 %v132
    %287 = vmatmul.mubr.f32.gmra.mxu0 %v145
    %v288 = vpop.f32.mrf.mxu0
    %v289 = vadd.f32 0.0, %v288
    %v290 = vpop.f32.mrf.mxu0
    %291 = vdwg.mxu0
    %292 = vmatprep.subr.mxu0 0.0
    %293 = vmatpush1.msra.mxu0 %v206
    %294 = vmatprep.subr.mxu0 0.0
    %295 = vmatpush1.msra.mxu0 %v205
    %296 = vmatprep.subr.mxu0 0.0
    %297 = vmatpush1.msra.mxu0 %v204
    %298 = vmatprep.subr.mxu0 0.0
    %299 = vmatpush1.msra.mxu0 %v203
    %300 = vmatprep.subr.mxu0 0.0
    %301 = vmatpush1.msra.mxu0 %v202
    %302 = vmatprep.subr.mxu0 0.0
    %303 = vmatpush1.msra.mxu0 %v201
    %304 = vmatprep.subr.mxu0 0.0
    %305 = vmatpush1.msra.mxu0 %v200
    %306 = vmatprep.subr.mxu0 0.0
    %307 = vmatpush1.msra.mxu0 %v199
    %308 = vmatprep.subr.mxu0 0.0
    %309 = vmatpush1.msra.mxu0 %v198
    %310 = vmatprep.subr.mxu0 0.0
    %311 = vmatpush1.msra.mxu0 %v197
    %312 = vmatprep.subr.mxu0 0.0
    %313 = vmatpush1.msra.mxu0 %v196
    %314 = vmatprep.subr.mxu0 0.0
    %315 = vmatpush1.msra.mxu0 %v195
    %316 = vmatprep.subr.mxu0 0.0
    %317 = vmatpush1.msra.mxu0 %v194
    %318 = vmatprep.subr.mxu0 0.0
    %319 = vmatpush1.msra.mxu0 %v193
    %320 = vmatprep.subr.mxu0 0.0
    %321 = vmatpush1.msra.mxu0 %v192
    %322 = vmatprep.subr.mxu0 0.0
    %323 = vmatpush1.msra.mxu0 %v191
    %324 = vmatprep.subr.mxu0 0.0
    %325 = vmatpush2.msra.mxu0 0.0
    %326 = vmatprep.subr.mxu0 0.0
    %327 = vmatpush2.msra.mxu0 0.0
    %328 = vmatprep.subr.mxu0 0.0
    %329 = vmatpush2.msra.mxu0 0.0
    %330 = vmatprep.subr.mxu0 0.0
    %331 = vmatpush2.msra.mxu0 0.0
    %332 = vmatprep.subr.mxu0 0.0
    %333 = vmatpush2.msra.mxu0 0.0
    %334 = vmatprep.subr.mxu0 0.0
    %335 = vmatpush2.msra.mxu0 0.0
    %336 = vmatprep.subr.mxu0 0.0
    %337 = vmatpush2.msra.mxu0 0.0
    %338 = vmatprep.subr.mxu0 0.0
    %339 = vmatpush2.msra.mxu0 0.0
    %340 = vmatprep.subr.mxu0 0.0
    %341 = vmatpush2.msra.mxu0 0.0
    %342 = vmatprep.subr.mxu0 0.0
    %343 = vmatpush2.msra.mxu0 0.0
    %344 = vmatprep.subr.mxu0 0.0
    %345 = vmatpush2.msra.mxu0 0.0
    %346 = vmatprep.subr.mxu0 0.0
    %347 = vmatpush2.msra.mxu0 0.0
    %348 = vmatprep.subr.mxu0 0.0
    %349 = vmatpush2.msra.mxu0 0.0
    %350 = vmatprep.subr.mxu0 0.0
    %351 = vmatpush2.msra.mxu0 0.0
    %352 = vmatprep.subr.mxu0 0.0
    %353 = vmatpush2.msra.mxu0 0.0
    %354 = vmatprep.subr.mxu0 0.0
    %355 = vmatpush2.msra.mxu0 0.0
    %356 = vmatprep.mubr.f32.mxu0 0.0
    %357 = vmatmul.mubr.f32.gmra.mxu0 %v155
    %v358 = vpop.f32.mrf.mxu0
    %v359 = vadd.f32 %v274, %v358
    %v360 = vpop.f32.mrf.mxu0
    %361 = vmatprep.mubr.f32.mxu0 0.0
    %362 = vmatmul.mubr.f32.gmra.mxu0 %v156
    %v363 = vpop.f32.mrf.mxu0
    %v364 = vadd.f32 %v279, %v363
    %v365 = vpop.f32.mrf.mxu0
    %366 = vmatprep.mubr.f32.mxu0 0.0
    %367 = vmatmul.mubr.f32.gmra.mxu0 %v157
    %v368 = vpop.f32.mrf.mxu0
    %v369 = vadd.f32 %v284, %v368
    %v370 = vpop.f32.mrf.mxu0
    %371 = vmatprep.mubr.f32.mxu0 0.0
    %372 = vmatmul.mubr.f32.gmra.mxu0 %v158
    %v373 = vpop.f32.mrf.mxu0
    %v374 = vadd.f32 %v289, %v373
    %v375 = vpop.f32.mrf.mxu0
    %376 = vdwg.mxu0
    %v377 = vld [vmem:[%s3] sm:$0x1]
    %v378 = vld [vmem:[%s4] sm:$0x1]
    %v379 = vadd.f32 %v359, %v364
    %v380 = vadd.f32 %v379, %v369
    %v381 = vadd.f32 %v380, %v374
    %v382 = vrot.slane %v381, 4
    %v383 = vadd.f32 %v381, %v382
    %v384 = vrot.slane %v383, 2
    %v385 = vadd.f32 %v383, %v384
    %v386 = vrot.slane %v385, 1
    %v387 = vadd.f32 %v385, %v386
    %v388 = vmul.f32 %v359, %v359
    %v389 = vmul.f32 %v364, %v364
    %v390 = vmul.f32 %v369, %v369
    %v391 = vmul.f32 %v374, %v374
    %v392 = vadd.f32 %v388, %v389
    %v393 = vadd.f32 %v392, %v390
    %v394 = vadd.f32 %v393, %v391
    %v395 = vrot.slane %v394, 4
    %v396 = vadd.f32 %v394, %v395
    %v397 = vrot.slane %v396, 2
    %v398 = vadd.f32 %v396, %v397
    %v399 = vrot.slane %v398, 1
    %v400 = vadd.f32 %v398, %v399
    %401 = vrot.lane.b32.xlu0 %v387, 8
    %v402 = vpop.permute.xlu0 %401
    %v403 = vadd.f32 %v387, %v402
    %404 = vrot.lane.b32.xlu0 %v403, 16
    %v405 = vpop.permute.xlu0 %404
    %v406 = vadd.f32 %v403, %v405
    %407 = vrot.lane.b32.xlu0 %v406, 32
    %v408 = vpop.permute.xlu0 %407
    %v409 = vadd.f32 %v406, %v408
    %410 = vrot.lane.b32.xlu0 %v409, 64
    %v411 = vpop.permute.xlu0 %410
    %v412 = vadd.f32 %v409, %v411
    %v413 = vmul.f32 %v412, 0.001953125
    %414 = vrot.lane.b32.xlu0 %v400, 8
    %v415 = vpop.permute.xlu0 %414
    %v416 = vadd.f32 %v400, %v415
    %417 = vrot.lane.b32.xlu0 %v416, 16
    %v418 = vpop.permute.xlu0 %417
    %v419 = vadd.f32 %v416, %v418
    %420 = vrot.lane.b32.xlu0 %v419, 32
    %v421 = vpop.permute.xlu0 %420
    %v422 = vadd.f32 %v419, %v421
    %423 = vrot.lane.b32.xlu0 %v422, 64
    %v424 = vpop.permute.xlu0 %423
    %v425 = vadd.f32 %v422, %v424
    %v426 = vmul.f32 %v425, 0.001953125
    %v427 = vmul.f32 %v413, %v413
    %v428 = vsub.f32 %v426, %v427
    %v429 = vadd.f32 %v428, 1e-05
    %v430 = vrsqrt.pop %v429
    %v431 = vmul.f32 %v377, %v430
    %v432 = vmul.f32 %v413, %v431
    %v433 = vsub.f32 %v378, %v432
    %v435 = vlaneseq
    %v436 = vshrl.u32 %v435, 7
    %v437 = vsub.s32 0, %v436
    %v438 = vrot.slane %v431, %v437
    %v440 = vmul.f32 %v359, %v438
    %v441 = vmul.f32 %v364, %v438
    %v442 = vmul.f32 %v369, %v438
    %v443 = vmul.f32 %v374, %v438
    %v445 = vlaneseq
    %v446 = vshrl.u32 %v445, 7
    %v447 = vsub.s32 0, %v446
    %v448 = vrot.slane %v433, %v447
    %v450 = vadd.f32 %v440, %v448
    %v451 = vadd.f32 %v441, %v448
    %v452 = vadd.f32 %v442, %v448
    %v453 = vadd.f32 %v443, %v448
    %v454 = vmul.f32 %v450, 0.01
    %v455 = vmul.f32 %v451, 0.01
    %v456 = vmul.f32 %v452, 0.01
    %v457 = vmul.f32 %v453, 0.01
    %v458 = vmax.f32 %v450, %v454
    %v459 = vmax.f32 %v451, %v455
    %v460 = vmax.f32 %v452, %v456
    %v461 = vmax.f32 %v453, %v457
    %v462 = vrot.slane %v458, 7
    %v463 = vrot.slane %v459, 7
    %v464 = vrot.slane %v460, 7
    %v465 = vrot.slane %v461, 7
    %v466 = vsel %vm137, %v464, %v465
    %v467 = vsel %vm137, %v463, %v464
    %v468 = vsel %vm137, %v462, %v463
    %v469 = vsel %vm137, %v465, %v462
    %v470 = vsel %vm121, %v469, 0.0
    %v471 = vsel %vm122, %v468, 0.0
    %v472 = vsel %vm123, %v467, 0.0
    %v473 = vsel %vm124, %v466, 0.0
    %v474 = vrot.slane %v458, 1
    %v475 = vrot.slane %v459, 1
    %v476 = vrot.slane %v460, 1
    %v477 = vrot.slane %v461, 1
    %v478 = vsel %vm150, %v476, %v477
    %v479 = vsel %vm150, %v475, %v476
    %v480 = vsel %vm150, %v474, %v475
    %v481 = vsel %vm150, %v477, %v474
    %v482 = vsel %vm125, %v480, 0.0
    %v483 = vsel %vm126, %v479, 0.0
    %v484 = vsel %vm127, %v478, 0.0
    %v485 = vsel %vm128, %v481, 0.0
    %v486 = vld [vmem:[#allocation7] sm:$0xff]
    %v487 = vld [vmem:[#allocation7 + $0x8] sm:$0xff]
    %v488 = vld [vmem:[#allocation7 + $0x10] sm:$0xff]
    %v489 = vld [vmem:[#allocation7 + $0x18] sm:$0xff]
    %v490 = vld [vmem:[#allocation7 + $0x20] sm:$0xff]
    %v491 = vld [vmem:[#allocation7 + $0x28] sm:$0xff]
    %v492 = vld [vmem:[#allocation7 + $0x30] sm:$0xff]
    %v493 = vld [vmem:[#allocation7 + $0x38] sm:$0xff]
    %v494 = vld [vmem:[#allocation7 + $0x40] sm:$0xff]
    %v495 = vld [vmem:[#allocation7 + $0x48] sm:$0xff]
    %v496 = vld [vmem:[#allocation7 + $0x50] sm:$0xff]
    %v497 = vld [vmem:[#allocation7 + $0x58] sm:$0xff]
    %v498 = vld [vmem:[#allocation7 + $0x60] sm:$0xff]
    %v499 = vld [vmem:[#allocation7 + $0x68] sm:$0xff]
    %v500 = vld [vmem:[#allocation7 + $0x70] sm:$0xff]
    %v501 = vld [vmem:[#allocation7 + $0x78] sm:$0xff]
    %v502 = vld [vmem:[#allocation7 + $0x80] sm:$0xff]
    %v503 = vld [vmem:[#allocation7 + $0x88] sm:$0xff]
    %v504 = vld [vmem:[#allocation7 + $0x90] sm:$0xff]
    %v505 = vld [vmem:[#allocation7 + $0x98] sm:$0xff]
    %v506 = vld [vmem:[#allocation7 + $0xa0] sm:$0xff]
    %v507 = vld [vmem:[#allocation7 + $0xa8] sm:$0xff]
    %v508 = vld [vmem:[#allocation7 + $0xb0] sm:$0xff]
    %v509 = vld [vmem:[#allocation7 + $0xb8] sm:$0xff]
    %v510 = vld [vmem:[#allocation7 + $0xc0] sm:$0xff]
    %v511 = vld [vmem:[#allocation7 + $0xc8] sm:$0xff]
    %v512 = vld [vmem:[#allocation7 + $0xd0] sm:$0xff]
    %v513 = vld [vmem:[#allocation7 + $0xd8] sm:$0xff]
    %v514 = vld [vmem:[#allocation7 + $0xe0] sm:$0xff]
    %v515 = vld [vmem:[#allocation7 + $0xe8] sm:$0xff]
    %v516 = vld [vmem:[#allocation7 + $0xf0] sm:$0xff]
    %v517 = vld [vmem:[#allocation7 + $0xf8] sm:$0xff]
    %v518 = vld [vmem:[#allocation7 + $0x100] sm:$0xff]
    %v519 = vld [vmem:[#allocation7 + $0x108] sm:$0xff]
    %v520 = vld [vmem:[#allocation7 + $0x110] sm:$0xff]
    %v521 = vld [vmem:[#allocation7 + $0x118] sm:$0xff]
    %v522 = vld [vmem:[#allocation7 + $0x120] sm:$0xff]
    %v523 = vld [vmem:[#allocation7 + $0x128] sm:$0xff]
    %v524 = vld [vmem:[#allocation7 + $0x130] sm:$0xff]
    %v525 = vld [vmem:[#allocation7 + $0x138] sm:$0xff]
    %v526 = vld [vmem:[#allocation7 + $0x140] sm:$0xff]
    %v527 = vld [vmem:[#allocation7 + $0x148] sm:$0xff]
    %v528 = vld [vmem:[#allocation7 + $0x150] sm:$0xff]
    %v529 = vld [vmem:[#allocation7 + $0x158] sm:$0xff]
    %v530 = vld [vmem:[#allocation7 + $0x160] sm:$0xff]
    %v531 = vld [vmem:[#allocation7 + $0x168] sm:$0xff]
    %v532 = vld [vmem:[#allocation7 + $0x170] sm:$0xff]
    %v533 = vld [vmem:[#allocation7 + $0x178] sm:$0xff]
    %534 = vmatprep.subr.mxu0 0.0
    %535 = vmatpush1.msra.mxu0 %v501
    %536 = vmatprep.subr.mxu0 0.0
    %537 = vmatpush1.msra.mxu0 %v500
    %538 = vmatprep.subr.mxu0 0.0
    %539 = vmatpush1.msra.mxu0 %v499
    %540 = vmatprep.subr.mxu0 0.0
    %541 = vmatpush1.msra.mxu0 %v498
    %542 = vmatprep.subr.mxu0 0.0
    %543 = vmatpush1.msra.mxu0 %v497
    %544 = vmatprep.subr.mxu0 0.0
    %545 = vmatpush1.msra.mxu0 %v496
    %546 = vmatprep.subr.mxu0 0.0
    %547 = vmatpush1.msra.mxu0 %v495
    %548 = vmatprep.subr.mxu0 0.0
    %549 = vmatpush1.msra.mxu0 %v494
    %550 = vmatprep.subr.mxu0 0.0
    %551 = vmatpush1.msra.mxu0 %v493
    %552 = vmatprep.subr.mxu0 0.0
    %553 = vmatpush1.msra.mxu0 %v492
    %554 = vmatprep.subr.mxu0 0.0
    %555 = vmatpush1.msra.mxu0 %v491
    %556 = vmatprep.subr.mxu0 0.0
    %557 = vmatpush1.msra.mxu0 %v490
    %558 = vmatprep.subr.mxu0 0.0
    %559 = vmatpush1.msra.mxu0 %v489
    %560 = vmatprep.subr.mxu0 0.0
    %561 = vmatpush1.msra.mxu0 %v488
    %562 = vmatprep.subr.mxu0 0.0
    %563 = vmatpush1.msra.mxu0 %v487
    %564 = vmatprep.subr.mxu0 0.0
    %565 = vmatpush1.msra.mxu0 %v486
    %566 = vmatprep.subr.mxu0 0.0
    %567 = vmatpush2.msra.mxu0 %v517
    %568 = vmatprep.subr.mxu0 0.0
    %569 = vmatpush2.msra.mxu0 %v516
    %570 = vmatprep.subr.mxu0 0.0
    %571 = vmatpush2.msra.mxu0 %v515
    %572 = vmatprep.subr.mxu0 0.0
    %573 = vmatpush2.msra.mxu0 %v514
    %574 = vmatprep.subr.mxu0 0.0
    %575 = vmatpush2.msra.mxu0 %v513
    %576 = vmatprep.subr.mxu0 0.0
    %577 = vmatpush2.msra.mxu0 %v512
    %578 = vmatprep.subr.mxu0 0.0
    %579 = vmatpush2.msra.mxu0 %v511
    %580 = vmatprep.subr.mxu0 0.0
    %581 = vmatpush2.msra.mxu0 %v510
    %582 = vmatprep.subr.mxu0 0.0
    %583 = vmatpush2.msra.mxu0 %v509
    %584 = vmatprep.subr.mxu0 0.0
    %585 = vmatpush2.msra.mxu0 %v508
    %586 = vmatprep.subr.mxu0 0.0
    %587 = vmatpush2.msra.mxu0 %v507
    %588 = vmatprep.subr.mxu0 0.0
    %589 = vmatpush2.msra.mxu0 %v506
    %590 = vmatprep.subr.mxu0 0.0
    %591 = vmatpush2.msra.mxu0 %v505
    %592 = vmatprep.subr.mxu0 0.0
    %593 = vmatpush2.msra.mxu0 %v504
    %594 = vmatprep.subr.mxu0 0.0
    %595 = vmatpush2.msra.mxu0 %v503
    %596 = vmatprep.subr.mxu0 0.0
    %597 = vmatpush2.msra.mxu0 %v502
    %598 = vmatprep.mubr.f32.mxu0 %v458
    %599 = vmatmul.mubr.f32.gmra.mxu0 %v470
    %v600 = vpop.f32.mrf.mxu0
    %v601 = vadd.f32 0.0, %v600
    %v602 = vpop.f32.mrf.mxu0
    %603 = vmatprep.mubr.f32.mxu0 %v459
    %604 = vmatmul.mubr.f32.gmra.mxu0 %v471
    %v605 = vpop.f32.mrf.mxu0
    %v606 = vadd.f32 0.0, %v605
    %v607 = vpop.f32.mrf.mxu0
    %608 = vmatprep.mubr.f32.mxu0 %v460
    %609 = vmatmul.mubr.f32.gmra.mxu0 %v472
    %v610 = vpop.f32.mrf.mxu0
    %v611 = vadd.f32 0.0, %v610
    %v612 = vpop.f32.mrf.mxu0
    %613 = vmatprep.mubr.f32.mxu0 %v461
    %614 = vmatmul.mubr.f32.gmra.mxu0 %v473
    %v615 = vpop.f32.mrf.mxu0
    %v616 = vadd.f32 0.0, %v615
    %v617 = vpop.f32.mrf.mxu0
    %618 = vdwg.mxu0
    %619 = vmatprep.subr.mxu0 0.0
    %620 = vmatpush1.msra.mxu0 %v533
    %621 = vmatprep.subr.mxu0 0.0
    %622 = vmatpush1.msra.mxu0 %v532
    %623 = vmatprep.subr.mxu0 0.0
    %624 = vmatpush1.msra.mxu0 %v531
    %625 = vmatprep.subr.mxu0 0.0
    %626 = vmatpush1.msra.mxu0 %v530
    %627 = vmatprep.subr.mxu0 0.0
    %628 = vmatpush1.msra.mxu0 %v529
    %629 = vmatprep.subr.mxu0 0.0
    %630 = vmatpush1.msra.mxu0 %v528
    %631 = vmatprep.subr.mxu0 0.0
    %632 = vmatpush1.msra.mxu0 %v527
    %633 = vmatprep.subr.mxu0 0.0
    %634 = vmatpush1.msra.mxu0 %v526
    %635 = vmatprep.subr.mxu0 0.0
    %636 = vmatpush1.msra.mxu0 %v525
    %637 = vmatprep.subr.mxu0 0.0
    %638 = vmatpush1.msra.mxu0 %v524
    %639 = vmatprep.subr.mxu0 0.0
    %640 = vmatpush1.msra.mxu0 %v523
    %641 = vmatprep.subr.mxu0 0.0
    %642 = vmatpush1.msra.mxu0 %v522
    %643 = vmatprep.subr.mxu0 0.0
    %644 = vmatpush1.msra.mxu0 %v521
    %645 = vmatprep.subr.mxu0 0.0
    %646 = vmatpush1.msra.mxu0 %v520
    %647 = vmatprep.subr.mxu0 0.0
    %648 = vmatpush1.msra.mxu0 %v519
    %649 = vmatprep.subr.mxu0 0.0
    %650 = vmatpush1.msra.mxu0 %v518
    %651 = vmatprep.subr.mxu0 0.0
    %652 = vmatpush2.msra.mxu0 0.0
    %653 = vmatprep.subr.mxu0 0.0
    %654 = vmatpush2.msra.mxu0 0.0
    %655 = vmatprep.subr.mxu0 0.0
    %656 = vmatpush2.msra.mxu0 0.0
    %657 = vmatprep.subr.mxu0 0.0
    %658 = vmatpush2.msra.mxu0 0.0
    %659 = vmatprep.subr.mxu0 0.0
    %660 = vmatpush2.msra.mxu0 0.0
    %661 = vmatprep.subr.mxu0 0.0
    %662 = vmatpush2.msra.mxu0 0.0
    %663 = vmatprep.subr.mxu0 0.0
    %664 = vmatpush2.msra.mxu0 0.0
    %665 = vmatprep.subr.mxu0 0.0
    %666 = vmatpush2.msra.mxu0 0.0
    %667 = vmatprep.subr.mxu0 0.0
    %668 = vmatpush2.msra.mxu0 0.0
    %669 = vmatprep.subr.mxu0 0.0
    %670 = vmatpush2.msra.mxu0 0.0
    %671 = vmatprep.subr.mxu0 0.0
    %672 = vmatpush2.msra.mxu0 0.0
    %673 = vmatprep.subr.mxu0 0.0
    %674 = vmatpush2.msra.mxu0 0.0
    %675 = vmatprep.subr.mxu0 0.0
    %676 = vmatpush2.msra.mxu0 0.0
    %677 = vmatprep.subr.mxu0 0.0
    %678 = vmatpush2.msra.mxu0 0.0
    %679 = vmatprep.subr.mxu0 0.0
    %680 = vmatpush2.msra.mxu0 0.0
    %681 = vmatprep.subr.mxu0 0.0
    %682 = vmatpush2.msra.mxu0 0.0
    %683 = vmatprep.mubr.f32.mxu0 0.0
    %684 = vmatmul.mubr.f32.gmra.mxu0 %v482
    %v685 = vpop.f32.mrf.mxu0
    %v686 = vadd.f32 %v601, %v685
    %v687 = vpop.f32.mrf.mxu0
    %688 = vmatprep.mubr.f32.mxu0 0.0
    %689 = vmatmul.mubr.f32.gmra.mxu0 %v483
    %v690 = vpop.f32.mrf.mxu0
    %v691 = vadd.f32 %v606, %v690
    %v692 = vpop.f32.mrf.mxu0
    %693 = vmatprep.mubr.f32.mxu0 0.0
    %694 = vmatmul.mubr.f32.gmra.mxu0 %v484
    %v695 = vpop.f32.mrf.mxu0
    %v696 = vadd.f32 %v611, %v695
    %v697 = vpop.f32.mrf.mxu0
    %698 = vmatprep.mubr.f32.mxu0 0.0
    %699 = vmatmul.mubr.f32.gmra.mxu0 %v485
    %v700 = vpop.f32.mrf.mxu0
    %v701 = vadd.f32 %v616, %v700
    %v702 = vpop.f32.mrf.mxu0
    %703 = vdwg.mxu0
    %v704 = vld [vmem:[%s5] sm:$0x1]
    %v705 = vld [vmem:[%s6] sm:$0x1]
    %v706 = vadd.f32 %v686, %v691
    %v707 = vadd.f32 %v706, %v696
    %v708 = vadd.f32 %v707, %v701
    %v709 = vrot.slane %v708, 4
    %v710 = vadd.f32 %v708, %v709
    %v711 = vrot.slane %v710, 2
    %v712 = vadd.f32 %v710, %v711
    %v713 = vrot.slane %v712, 1
    %v714 = vadd.f32 %v712, %v713
    %v715 = vmul.f32 %v686, %v686
    %v716 = vmul.f32 %v691, %v691
    %v717 = vmul.f32 %v696, %v696
    %v718 = vmul.f32 %v701, %v701
    %v719 = vadd.f32 %v715, %v716
    %v720 = vadd.f32 %v719, %v717
    %v721 = vadd.f32 %v720, %v718
    %v722 = vrot.slane %v721, 4
    %v723 = vadd.f32 %v721, %v722
    %v724 = vrot.slane %v723, 2
    %v725 = vadd.f32 %v723, %v724
    %v726 = vrot.slane %v725, 1
    %v727 = vadd.f32 %v725, %v726
    %728 = vrot.lane.b32.xlu0 %v714, 8
    %v729 = vpop.permute.xlu0 %728
    %v730 = vadd.f32 %v714, %v729
    %731 = vrot.lane.b32.xlu0 %v730, 16
    %v732 = vpop.permute.xlu0 %731
    %v733 = vadd.f32 %v730, %v732
    %734 = vrot.lane.b32.xlu0 %v733, 32
    %v735 = vpop.permute.xlu0 %734
    %v736 = vadd.f32 %v733, %v735
    %737 = vrot.lane.b32.xlu0 %v736, 64
    %v738 = vpop.permute.xlu0 %737
    %v739 = vadd.f32 %v736, %v738
    %v740 = vmul.f32 %v739, 0.001953125
    %741 = vrot.lane.b32.xlu0 %v727, 8
    %v742 = vpop.permute.xlu0 %741
    %v743 = vadd.f32 %v727, %v742
    %744 = vrot.lane.b32.xlu0 %v743, 16
    %v745 = vpop.permute.xlu0 %744
    %v746 = vadd.f32 %v743, %v745
    %747 = vrot.lane.b32.xlu0 %v746, 32
    %v748 = vpop.permute.xlu0 %747
    %v749 = vadd.f32 %v746, %v748
    %750 = vrot.lane.b32.xlu0 %v749, 64
    %v751 = vpop.permute.xlu0 %750
    %v752 = vadd.f32 %v749, %v751
    %v753 = vmul.f32 %v752, 0.001953125
    %v754 = vmul.f32 %v740, %v740
    %v755 = vsub.f32 %v753, %v754
    %v756 = vadd.f32 %v755, 1e-05
    %v757 = vrsqrt.pop %v756
    %v758 = vmul.f32 %v704, %v757
    %v759 = vmul.f32 %v740, %v758
    %v760 = vsub.f32 %v705, %v759
    %v762 = vlaneseq
    %v763 = vshrl.u32 %v762, 7
    %v764 = vsub.s32 0, %v763
    %v765 = vrot.slane %v758, %v764
    %v767 = vmul.f32 %v686, %v765
    %v768 = vmul.f32 %v691, %v765
    %v769 = vmul.f32 %v696, %v765
    %v770 = vmul.f32 %v701, %v765
    %v772 = vlaneseq
    %v773 = vshrl.u32 %v772, 7
    %v774 = vsub.s32 0, %v773
    %v775 = vrot.slane %v760, %v774
    %v777 = vadd.f32 %v767, %v775
    %v778 = vadd.f32 %v768, %v775
    %v779 = vadd.f32 %v769, %v775
    %v780 = vadd.f32 %v770, %v775
    %v781 = vadd.f32 %v777, %v129
    %v782 = vadd.f32 %v778, %v130
    %v783 = vadd.f32 %v779, %v131
    %v784 = vadd.f32 %v780, %v132
    %v785 = vmul.f32 %v781, 0.01
    %v786 = vmul.f32 %v782, 0.01
    %v787 = vmul.f32 %v783, 0.01
    %v788 = vmul.f32 %v784, 0.01
    %v789 = vmax.f32 %v781, %v785
    %v790 = vmax.f32 %v782, %v786
    %v791 = vmax.f32 %v783, %v787
    %v792 = vmax.f32 %v784, %v788
    %793 = vst [vmem:[#allocation8] sm:$0xff] %v789
    %794 = vst [vmem:[#allocation8 + $0x8] sm:$0xff] %v790
    %795 = vst [vmem:[#allocation8 + $0x10] sm:$0xff] %v791
    %796 = vst [vmem:[#allocation8 + $0x18] sm:$0xff] %v792
    // Predicated region
    $region42: #{resnet_block_lane_dense.1} parent=1 // pred_check
      _
    $region43: #{resnet_block_lane_dense.1} parent=1 // pred_check_branch
      %798 = sbr.rel (0) target = $region45
    $region44: #{resnet_block_lane_dense.1} parent=1 // pred_region
      %s800 = ssub.s32 512, 512
      %801 = vsyncadd [#allocation4], %s800
      %s802 = sshll.u32 [#allocation8], 4
      %s803 = int_to_ptr.vmem [resolvable:$true] %s802
      %808 = dma.vmem_to_hbm [thread:$0]  %s803, 512, %s7, [#allocation4], 128, 128, 8
    $region45: #{resnet_block_lane_dense.1} parent=1 // pred_fallthru
      _
    // Predicated region
    $region46: #{resnet_block_lane_dense.1} parent=1 // pred_check
      _
    $region47: #{resnet_block_lane_dense.1} parent=1 // pred_check_branch
      %810 = sbr.rel (0) target = $region49
    $region48: #{resnet_block_lane_dense.1} parent=1 // pred_region
      %811 = dma.done [#allocation4], 512
    $region49: #{resnet_block_lane_dense.1} parent=1 // pred_fallthru
      _
    %812 = vsyncpa [#allocation3], 1
    %813 = vsyncpa [#allocation6], 1
    %814 = vsyncpa [#allocation4], 1

</llo_original>
